<compile_context>
chip_gen: v6e
topology: v6e:2x2x1
jax: 0.10.0
libtpu: 0.0.40
codegen_flags: <defaults>
</compile_context>

<pallas_src>
import functools

import jax
import jax.numpy as jnp
from jax import lax
from jax.experimental import pallas as pl
from jax.experimental.pallas import tpu as pltpu


def _tst_kernel(f1_ref, f2_ref, wp_ref, wm_ref, scale_ref, bias_ref, out_ref,
                xs_ref, xd_ref, *, tile_h, w_pad, K, Cin):
    """One grid step = one (batch, row-tile).

    f1_ref/f2_ref      : (Cin, (tile_h + 2p + 1) * w_pad)  bf16 flattened padded rows
    wp_ref/wm_ref      : (Cout, K*K*Cin)                   bf16 folded im2col weights
    scale_ref/bias_ref : (Cout, 1) f32                     folded eval-mode BatchNorm
    out_ref            : (Cout, tile_h * w_pad)            (cols x >= W are junk, cut in wrapper)
    xs_ref/xd_ref      : (K*K*Cin, tile_h*w_pad) bf16      im2col scratch (sum / diff branch)
    """
    L = tile_h * w_pad

    # Symmetry fold computed in-kernel (two cheap VPU ops; removes two HBM arrays
    # the wrapper used to materialize).
    s = f1_ref[...] + f2_ref[...]
    d = f1_ref[...] - f2_ref[...]

    # im2col: each tap is a contiguous slice of the flattened padded rows; stack the
    # K*K taps along the contraction dim so the conv is ONE deep matmul per branch.
    # Static Python loop => static slice offsets and static sublane store offsets.
    for ky in range(K):
        for kx in range(K):
            t = ky * K + kx
            off = ky * w_pad + kx
            xs_ref[t * Cin:(t + 1) * Cin, :] = s[:, off:off + L]
            xd_ref[t * Cin:(t + 1) * Cin, :] = d[:, off:off + L]

    # One MXU matmul per branch, contraction depth K*K*Cin; results stay in registers.
    a_s = jnp.dot(wp_ref[...], xs_ref[...], preferred_element_type=jnp.float32)
    a_d = jnp.dot(wm_ref[...], xd_ref[...], preferred_element_type=jnp.float32)

    scale = scale_ref[...]                      # (Cout, 1) broadcasts over lanes
    bias = bias_ref[...]
    d12 = jnp.maximum((a_s + a_d) * scale + bias, 0.0)   # = ReLU(BN(conv(f1,W0)+conv(f2,W1)))
    d21 = jnp.maximum((a_s - a_d) * scale + bias, 0.0)   # = ReLU(BN(conv(f2,W0)+conv(f1,W1)))
    out_ref[...] = (d12 + d21).astype(out_ref.dtype)


def _vmem_capacity_bytes():
    """Physical VMEM per core; falls back to the smallest current generation (v7x, 64 MiB)."""
    try:
        info = pltpu.get_tpu_info()
        for attr in ("vmem_capacity_bytes", "vmem_size_bytes", "vmem_bytes"):
            v = getattr(info, attr, None)
            if v:
                return int(v)
    except Exception:
        pass
    return 64 << 20


def _pick_row_tile(N, H, W, Cin, Cout, K, out_bytes, budget_bytes, min_steps=2):
    """Largest divisor of H whose per-step live buffers fit `budget_bytes`, preferring
    (a) >= min_steps grid steps (dual-TC megacore occupancy), then
    (b) lane-dense output rows (tile_h*w_pad multiple of 128), then (c) the largest tile."""
    p = (K - 1) // 2
    w_pad = W + 2 * p
    kkc = K * K * Cin
    best = None
    for th in range(1, H + 1):
        if H % th:
            continue
        th_pad = th + 2 * p + 1
        L = th * w_pad
        footprint = (2 * 2 * Cin * th_pad * w_pad * 2      # f1/f2 tiles, double-buffered, bf16
                     + 2 * Cout * L * out_bytes            # output tile, double-buffered
                     + 2 * kkc * L * 2                     # im2col scratch (S & D), bf16
                     + 2 * 2 * Cout * kkc * 2)             # folded weights, double-buffered, bf16
        if footprint > budget_bytes:
            continue
        key = ((N * (H // th)) >= min_steps, L % 128 == 0, th)
        if best is None or key > best:
            best = key
    return best[-1] if best is not None else 1


def temporal_symmetric_transformer(f1_nchw, f2_nchw, w_torch, gamma, beta,
                                   running_mean, running_var, *, kernel_size,
                                   eps=1e-5, row_tile=None, out_dtype=jnp.float32):
    """f1/f2: (N, Cin, H, W) f32. w_torch: (Cout, Cin, 2, K, K) (PyTorch Conv3d layout)."""
    N, Cin, H, W = f1_nchw.shape
    Cout = w_torch.shape[0]
    K = kernel_size
    if K % 2 != 1:
        raise ValueError("kernel_size must be odd for 'same' Conv3d padding.")
    p = (K - 1) // 2
    # Junk-column invariant: for every kept output column x < W each tap reads padded
    # column kx + x <= (K-1) + (W-1) < W + 2p = w_pad, so tap slices never wrap into the
    # next row for columns we keep.  Columns x >= W are junk and sliced off below.
    assert 2 * p == K - 1
    w_pad = W + 2 * p

    vmem_cap = _vmem_capacity_bytes()
    out_bytes = jnp.dtype(out_dtype).itemsize
    if row_tile is not None:
        tile_h = row_tile
        if H % tile_h:
            raise ValueError(f"row_tile={tile_h} must divide H={H}")
    else:
        tile_h = _pick_row_tile(N, H, W, Cin, Cout, K, out_bytes,
                                budget_bytes=max(8 << 20, int(vmem_cap * 0.4)))
    R = H // tile_h
    th_pad = tile_h + 2 * p + 1   # +1 spare bottom row keeps the last tap's slice in-bounds
    L = tile_h * w_pad
    KKC = K * K * Cin

    def prep(x):
        # cast first (halves pad/gather bytes) -> zero-pad spatial (extra bottom row)
        # -> overlapping row tiles flattened to contiguous rows*w_pad.
        xb = x.astype(jnp.bfloat16)
        xp = jnp.pad(xb, ((0, 0), (0, 0), (p, p + 1), (p, p)))
        row_idx = (jnp.arange(R) * tile_h)[:, None] + jnp.arange(th_pad)[None, :]
        xt = xp[:, :, row_idx, :]                       # (N, Cin, R, th_pad, w_pad)
        xt = jnp.transpose(xt, (0, 2, 1, 3, 4))
        return xt.reshape(N, R, Cin, th_pad * w_pad)
    # TODO(synk): move padding + overlapping row-window selection into the kernel
    # (memory_space=pl.ANY input + manual row-window DMA) so the duplicated
    # (N, R, Cin, th_pad*w_pad) windows never hit HBM.

    f1_t = prep(f1_nchw)
    f2_t = prep(f2_nchw)

    # (Cout, Cin, 2, K, K): fold temporal taps into sum/diff halves and concatenate the
    # K*K taps along the contraction dim in (ky, kx, ci) order to match the im2col buffer.
    w0 = w_torch[:, :, 0].astype(jnp.float32)
    w1 = w_torch[:, :, 1].astype(jnp.float32)

    def fold(w):
        return jnp.transpose(w, (0, 2, 3, 1)).reshape(Cout, KKC).astype(jnp.bfloat16)

    wp = fold((w0 + w1) * 0.5)
    wm = fold((w0 - w1) * 0.5)

    # Inference-mode BatchNorm folded into per-channel scale/bias (lane-broadcast layout).
    scale = (gamma / jnp.sqrt(running_var + eps)).astype(jnp.float32)
    bias = (beta - running_mean * scale).astype(jnp.float32)
    scale = scale.reshape(Cout, 1)
    bias = bias.reshape(Cout, 1)

    kernel = functools.partial(_tst_kernel, tile_h=tile_h, w_pad=w_pad, K=K, Cin=Cin)

    # Channel-major output (no post-kernel transpose) is legal when the per-tile lane
    # extent L equals the full last dim (R == 1) or is itself a multiple of 128.
    lane_dense = (L % 128 == 0) or (R == 1)
    if lane_dense:
        out_shape = jax.ShapeDtypeStruct((N, Cout, R * L), out_dtype)
        out_spec = pl.BlockSpec((None, Cout, L), lambda n, r: (n, 0, r))
    else:
        out_shape = jax.ShapeDtypeStruct((N, R, Cout, L), out_dtype)
        out_spec = pl.BlockSpec((None, None, Cout, L), lambda n, r: (n, r, 0, 0))

    out = pl.pallas_call(
        kernel,
        out_shape=out_shape,
        grid_spec=pltpu.PrefetchScalarGridSpec(
            num_scalar_prefetch=0,
            grid=(N, R),
            in_specs=[
                pl.BlockSpec((None, None, Cin, th_pad * w_pad), lambda n, r: (n, r, 0, 0)),
                pl.BlockSpec((None, None, Cin, th_pad * w_pad), lambda n, r: (n, r, 0, 0)),
                pl.BlockSpec((Cout, KKC), lambda n, r: (0, 0)),
                pl.BlockSpec((Cout, KKC), lambda n, r: (0, 0)),
                pl.BlockSpec((Cout, 1), lambda n, r: (0, 0)),
                pl.BlockSpec((Cout, 1), lambda n, r: (0, 0)),
            ],
            out_specs=out_spec,
            scratch_shapes=[
                pltpu.VMEM((KKC, L), jnp.bfloat16),   # im2col of S = f1 + f2
                pltpu.VMEM((KKC, L), jnp.bfloat16),   # im2col of D = f1 - f2
            ],
        ),
        compiler_params=pltpu.CompilerParams(
            dimension_semantics=("parallel", "parallel"),
            vmem_limit_bytes=min(vmem_cap * 3 // 4, 100 * 1024 * 1024),
        ),
    )(f1_t, f2_t, wp, wm, scale, bias)

    # Drop the w_pad-overhang junk columns (x >= W) and restore NCHW.
    if lane_dense:
        out = out.reshape(N, Cout, R, tile_h, w_pad)[..., :W]
        out = out.reshape(N, Cout, H, W)
    else:
        out = out.reshape(N, R, Cout, tile_h, w_pad)[..., :W]
        out = jnp.transpose(out, (0, 2, 1, 3, 4)).reshape(N, Cout, H, W)
    return out


def _reference(f1, f2, w_torch, gamma, beta, mean, var, *, kernel_size, eps=1e-5):
    """Pure-JAX f32 reference matching the PyTorch forward (eval-mode BN)."""
    K = kernel_size
    p = (K - 1) // 2
    w0 = w_torch[:, :, 0]  # (Cout, Cin, K, K)
    w1 = w_torch[:, :, 1]
    dn = ('NCHW', 'OIHW', 'NCHW')

    def conv(x, w):
        return lax.conv_general_dilated(x, w, window_strides=(1, 1),
                                        padding=[(p, p), (p, p)],
                                        dimension_numbers=dn)

    def bn_relu(x):
        s = (gamma / jnp.sqrt(var + eps)).reshape(1, -1, 1, 1)
        b = (beta - mean * gamma / jnp.sqrt(var + eps)).reshape(1, -1, 1, 1)
        return jnp.maximum(x * s + b, 0.0)

    d12 = bn_relu(conv(f1, w0) + conv(f2, w1))
    d21 = bn_relu(conv(f2, w0) + conv(f1, w1))
    return d12 + d21


if __name__ == "__main__":
    N, Cin, H, W = 2, 4, 16, 16
    Cout, K = 8, 3

    key = jax.random.PRNGKey(0)
    k1, k2, k3, k4, k5, k6, k7 = jax.random.split(key, 7)

    f1 = jax.random.normal(k1, (N, Cin, H, W), jnp.float32)
    f2 = jax.random.normal(k2, (N, Cin, H, W), jnp.float32)

    # Conv3d weight [Cout, Cin, 2, K, K], no bias; eval-mode BatchNorm parameters.
    w = jax.random.normal(k3, (Cout, Cin, 2, K, K), jnp.float32) * 0.1
    gamma = 1.0 + 0.1 * jax.random.normal(k4, (Cout,), jnp.float32)
    beta = 0.1 * jax.random.normal(k5, (Cout,), jnp.float32)
    running_mean = 0.1 * jax.random.normal(k6, (Cout,), jnp.float32)
    running_var = jnp.abs(jax.random.normal(k7, (Cout,), jnp.float32)) + 0.5

    ref = _reference(f1, f2, w, gamma, beta, running_mean, running_var, kernel_size=K)

    # Auto-picked tile (R == 1 at this size) -> channel-major output path, no transpose.
    out_auto = temporal_symmetric_transformer(
        f1, f2, w, gamma, beta, running_mean, running_var, kernel_size=K)
    out_auto = jax.block_until_ready(out_auto)
    assert out_auto.shape == (N, Cout, H, W), out_auto.shape
    # bf16 operands (f32 accumulation) => relaxed tolerance vs the f32 reference.
    assert jnp.allclose(out_auto, ref, atol=5e-2, rtol=5e-2), float(
        jnp.max(jnp.abs(out_auto - ref)))

    # Explicit row tiling (R == 2) -> exercises the multi-row-tile grid + fallback layout.
    out_tiled = temporal_symmetric_transformer(
        f1, f2, w, gamma, beta, running_mean, running_var, kernel_size=K, row_tile=8)
    out_tiled = jax.block_until_ready(out_tiled)
    assert out_tiled.shape == (N, Cout, H, W), out_tiled.shape
    assert jnp.allclose(out_tiled, ref, atol=5e-2, rtol=5e-2), float(
        jnp.max(jnp.abs(out_tiled - ref)))

    print("KERNEL_OK")
</pallas_src>

<mosaic_0001>
module attributes {stable_mosaic.version = 11 : i64} {
  func.func @_tst_kernel(%arg0: i32, %arg1: i32, %arg2: memref<1x1x4x342xbf16, #tpu.memory_space<vmem>>, %arg3: memref<1x1x4x342xbf16, #tpu.memory_space<vmem>>, %arg4: memref<8x36xbf16, #tpu.memory_space<vmem>>, %arg5: memref<8x36xbf16, #tpu.memory_space<vmem>>, %arg6: memref<8x1xf32, #tpu.memory_space<vmem>>, %arg7: memref<8x1xf32, #tpu.memory_space<vmem>>, %arg8: memref<1x8x288xf32, #tpu.memory_space<vmem>>, %arg9: memref<36x288xbf16, #tpu.memory_space<vmem>>, %arg10: memref<36x288xbf16, #tpu.memory_space<vmem>>) attributes {dimension_semantics = [#tpu.dimension_semantics<parallel>, #tpu.dimension_semantics<parallel>], iteration_bounds = array<i64: 2, 1>, scalar_prefetch = 0 : i64, scratch_operands = 2 : i64, tpu.core_type = #tpu.core_type<tc>, window_params = [{transform_indices = @transform_0, window_bounds = array<i64: 1, 1, 4, 342>}, {transform_indices = @transform_1, window_bounds = array<i64: 1, 1, 4, 342>}, {pipeline_mode = #tpu.pipeline_mode<synchronous>, transform_indices = @transform_2, window_bounds = array<i64: 8, 36>}, {pipeline_mode = #tpu.pipeline_mode<synchronous>, transform_indices = @transform_3, window_bounds = array<i64: 8, 36>}, {pipeline_mode = #tpu.pipeline_mode<synchronous>, transform_indices = @transform_4, window_bounds = array<i64: 8, 1>}, {pipeline_mode = #tpu.pipeline_mode<synchronous>, transform_indices = @transform_5, window_bounds = array<i64: 8, 1>}, {transform_indices = @transform_6, window_bounds = array<i64: 1, 8, 288>}]} {
    %c0 = arith.constant 0 : index
    %c0_0 = arith.constant 0 : index
    %c0_1 = arith.constant 0 : index
    %c0_2 = arith.constant 0 : index
    %0 = vector.load %arg2[%c0, %c0_0, %c0_1, %c0_2] : memref<1x1x4x342xbf16, #tpu.memory_space<vmem>>, vector<1x1x4x342xbf16>
    %1 = vector.shape_cast %0 : vector<1x1x4x342xbf16> to vector<4x342xbf16>
    %c0_3 = arith.constant 0 : index
    %c0_4 = arith.constant 0 : index
    %c0_5 = arith.constant 0 : index
    %c0_6 = arith.constant 0 : index
    %2 = vector.load %arg3[%c0_3, %c0_4, %c0_5, %c0_6] : memref<1x1x4x342xbf16, #tpu.memory_space<vmem>>, vector<1x1x4x342xbf16>
    %3 = vector.shape_cast %2 : vector<1x1x4x342xbf16> to vector<4x342xbf16>
    %4 = arith.addf %1, %3 : vector<4x342xbf16>
    %c0_7 = arith.constant 0 : index
    %c0_8 = arith.constant 0 : index
    %c0_9 = arith.constant 0 : index
    %c0_10 = arith.constant 0 : index
    %5 = vector.load %arg2[%c0_7, %c0_8, %c0_9, %c0_10] : memref<1x1x4x342xbf16, #tpu.memory_space<vmem>>, vector<1x1x4x342xbf16>
    %6 = vector.shape_cast %5 : vector<1x1x4x342xbf16> to vector<4x342xbf16>
    %c0_11 = arith.constant 0 : index
    %c0_12 = arith.constant 0 : index
    %c0_13 = arith.constant 0 : index
    %c0_14 = arith.constant 0 : index
    %7 = vector.load %arg3[%c0_11, %c0_12, %c0_13, %c0_14] : memref<1x1x4x342xbf16, #tpu.memory_space<vmem>>, vector<1x1x4x342xbf16>
    %8 = vector.shape_cast %7 : vector<1x1x4x342xbf16> to vector<4x342xbf16>
    %9 = arith.subf %6, %8 : vector<4x342xbf16>
    %10 = vector.extract_strided_slice %4 {offsets = [0, 0], sizes = [4, 288], strides = [1, 1]} : vector<4x342xbf16> to vector<4x288xbf16>
    %c0_15 = arith.constant 0 : index
    %c0_16 = arith.constant 0 : index
    %11 = vector.load %arg9[%c0_15, %c0_16] : memref<36x288xbf16, #tpu.memory_space<vmem>>, vector<4x288xbf16>
    tpu.vector_store %arg9[%c0_15, %c0_16], %10 {strides = array<i32>} : memref<36x288xbf16, #tpu.memory_space<vmem>>, vector<4x288xbf16>,
    %12 = vector.extract_strided_slice %9 {offsets = [0, 0], sizes = [4, 288], strides = [1, 1]} : vector<4x342xbf16> to vector<4x288xbf16>
    %c0_17 = arith.constant 0 : index
    %c0_18 = arith.constant 0 : index
    %13 = vector.load %arg10[%c0_17, %c0_18] : memref<36x288xbf16, #tpu.memory_space<vmem>>, vector<4x288xbf16>
    tpu.vector_store %arg10[%c0_17, %c0_18], %12 {strides = array<i32>} : memref<36x288xbf16, #tpu.memory_space<vmem>>, vector<4x288xbf16>,
    %14 = vector.extract_strided_slice %4 {offsets = [0, 1], sizes = [4, 288], strides = [1, 1]} : vector<4x342xbf16> to vector<4x288xbf16>
    %c4 = arith.constant 4 : index
    %c0_19 = arith.constant 0 : index
    %15 = vector.load %arg9[%c4, %c0_19] : memref<36x288xbf16, #tpu.memory_space<vmem>>, vector<4x288xbf16>
    tpu.vector_store %arg9[%c4, %c0_19], %14 {strides = array<i32>} : memref<36x288xbf16, #tpu.memory_space<vmem>>, vector<4x288xbf16>,
    %16 = vector.extract_strided_slice %9 {offsets = [0, 1], sizes = [4, 288], strides = [1, 1]} : vector<4x342xbf16> to vector<4x288xbf16>
    %c4_20 = arith.constant 4 : index
    %c0_21 = arith.constant 0 : index
    %17 = vector.load %arg10[%c4_20, %c0_21] : memref<36x288xbf16, #tpu.memory_space<vmem>>, vector<4x288xbf16>
    tpu.vector_store %arg10[%c4_20, %c0_21], %16 {strides = array<i32>} : memref<36x288xbf16, #tpu.memory_space<vmem>>, vector<4x288xbf16>,
    %18 = vector.extract_strided_slice %4 {offsets = [0, 2], sizes = [4, 288], strides = [1, 1]} : vector<4x342xbf16> to vector<4x288xbf16>
    %c8 = arith.constant 8 : index
    %c0_22 = arith.constant 0 : index
    %19 = vector.load %arg9[%c8, %c0_22] : memref<36x288xbf16, #tpu.memory_space<vmem>>, vector<4x288xbf16>
    tpu.vector_store %arg9[%c8, %c0_22], %18 {strides = array<i32>} : memref<36x288xbf16, #tpu.memory_space<vmem>>, vector<4x288xbf16>,
    %20 = vector.extract_strided_slice %9 {offsets = [0, 2], sizes = [4, 288], strides = [1, 1]} : vector<4x342xbf16> to vector<4x288xbf16>
    %c8_23 = arith.constant 8 : index
    %c0_24 = arith.constant 0 : index
    %21 = vector.load %arg10[%c8_23, %c0_24] : memref<36x288xbf16, #tpu.memory_space<vmem>>, vector<4x288xbf16>
    tpu.vector_store %arg10[%c8_23, %c0_24], %20 {strides = array<i32>} : memref<36x288xbf16, #tpu.memory_space<vmem>>, vector<4x288xbf16>,
    %22 = vector.extract_strided_slice %4 {offsets = [0, 18], sizes = [4, 288], strides = [1, 1]} : vector<4x342xbf16> to vector<4x288xbf16>
    %c12 = arith.constant 12 : index
    %c0_25 = arith.constant 0 : index
    %23 = vector.load %arg9[%c12, %c0_25] : memref<36x288xbf16, #tpu.memory_space<vmem>>, vector<4x288xbf16>
    tpu.vector_store %arg9[%c12, %c0_25], %22 {strides = array<i32>} : memref<36x288xbf16, #tpu.memory_space<vmem>>, vector<4x288xbf16>,
    %24 = vector.extract_strided_slice %9 {offsets = [0, 18], sizes = [4, 288], strides = [1, 1]} : vector<4x342xbf16> to vector<4x288xbf16>
    %c12_26 = arith.constant 12 : index
    %c0_27 = arith.constant 0 : index
    %25 = vector.load %arg10[%c12_26, %c0_27] : memref<36x288xbf16, #tpu.memory_space<vmem>>, vector<4x288xbf16>
    tpu.vector_store %arg10[%c12_26, %c0_27], %24 {strides = array<i32>} : memref<36x288xbf16, #tpu.memory_space<vmem>>, vector<4x288xbf16>,
    %26 = vector.extract_strided_slice %4 {offsets = [0, 19], sizes = [4, 288], strides = [1, 1]} : vector<4x342xbf16> to vector<4x288xbf16>
    %c16 = arith.constant 16 : index
    %c0_28 = arith.constant 0 : index
    %27 = vector.load %arg9[%c16, %c0_28] : memref<36x288xbf16, #tpu.memory_space<vmem>>, vector<4x288xbf16>
    tpu.vector_store %arg9[%c16, %c0_28], %26 {strides = array<i32>} : memref<36x288xbf16, #tpu.memory_space<vmem>>, vector<4x288xbf16>,
    %28 = vector.extract_strided_slice %9 {offsets = [0, 19], sizes = [4, 288], strides = [1, 1]} : vector<4x342xbf16> to vector<4x288xbf16>
    %c16_29 = arith.constant 16 : index
    %c0_30 = arith.constant 0 : index
    %29 = vector.load %arg10[%c16_29, %c0_30] : memref<36x288xbf16, #tpu.memory_space<vmem>>, vector<4x288xbf16>
    tpu.vector_store %arg10[%c16_29, %c0_30], %28 {strides = array<i32>} : memref<36x288xbf16, #tpu.memory_space<vmem>>, vector<4x288xbf16>,
    %30 = vector.extract_strided_slice %4 {offsets = [0, 20], sizes = [4, 288], strides = [1, 1]} : vector<4x342xbf16> to vector<4x288xbf16>
    %c20 = arith.constant 20 : index
    %c0_31 = arith.constant 0 : index
    %31 = vector.load %arg9[%c20, %c0_31] : memref<36x288xbf16, #tpu.memory_space<vmem>>, vector<4x288xbf16>
    tpu.vector_store %arg9[%c20, %c0_31], %30 {strides = array<i32>} : memref<36x288xbf16, #tpu.memory_space<vmem>>, vector<4x288xbf16>,
    %32 = vector.extract_strided_slice %9 {offsets = [0, 20], sizes = [4, 288], strides = [1, 1]} : vector<4x342xbf16> to vector<4x288xbf16>
    %c20_32 = arith.constant 20 : index
    %c0_33 = arith.constant 0 : index
    %33 = vector.load %arg10[%c20_32, %c0_33] : memref<36x288xbf16, #tpu.memory_space<vmem>>, vector<4x288xbf16>
    tpu.vector_store %arg10[%c20_32, %c0_33], %32 {strides = array<i32>} : memref<36x288xbf16, #tpu.memory_space<vmem>>, vector<4x288xbf16>,
    %34 = vector.extract_strided_slice %4 {offsets = [0, 36], sizes = [4, 288], strides = [1, 1]} : vector<4x342xbf16> to vector<4x288xbf16>
    %c24 = arith.constant 24 : index
    %c0_34 = arith.constant 0 : index
    %35 = vector.load %arg9[%c24, %c0_34] : memref<36x288xbf16, #tpu.memory_space<vmem>>, vector<4x288xbf16>
    tpu.vector_store %arg9[%c24, %c0_34], %34 {strides = array<i32>} : memref<36x288xbf16, #tpu.memory_space<vmem>>, vector<4x288xbf16>,
    %36 = vector.extract_strided_slice %9 {offsets = [0, 36], sizes = [4, 288], strides = [1, 1]} : vector<4x342xbf16> to vector<4x288xbf16>
    %c24_35 = arith.constant 24 : index
    %c0_36 = arith.constant 0 : index
    %37 = vector.load %arg10[%c24_35, %c0_36] : memref<36x288xbf16, #tpu.memory_space<vmem>>, vector<4x288xbf16>
    tpu.vector_store %arg10[%c24_35, %c0_36], %36 {strides = array<i32>} : memref<36x288xbf16, #tpu.memory_space<vmem>>, vector<4x288xbf16>,
    %38 = vector.extract_strided_slice %4 {offsets = [0, 37], sizes = [4, 288], strides = [1, 1]} : vector<4x342xbf16> to vector<4x288xbf16>
    %c28 = arith.constant 28 : index
    %c0_37 = arith.constant 0 : index
    %39 = vector.load %arg9[%c28, %c0_37] : memref<36x288xbf16, #tpu.memory_space<vmem>>, vector<4x288xbf16>
    tpu.vector_store %arg9[%c28, %c0_37], %38 {strides = array<i32>} : memref<36x288xbf16, #tpu.memory_space<vmem>>, vector<4x288xbf16>,
    %40 = vector.extract_strided_slice %9 {offsets = [0, 37], sizes = [4, 288], strides = [1, 1]} : vector<4x342xbf16> to vector<4x288xbf16>
    %c28_38 = arith.constant 28 : index
    %c0_39 = arith.constant 0 : index
    %41 = vector.load %arg10[%c28_38, %c0_39] : memref<36x288xbf16, #tpu.memory_space<vmem>>, vector<4x288xbf16>
    tpu.vector_store %arg10[%c28_38, %c0_39], %40 {strides = array<i32>} : memref<36x288xbf16, #tpu.memory_space<vmem>>, vector<4x288xbf16>,
    %42 = vector.extract_strided_slice %4 {offsets = [0, 38], sizes = [4, 288], strides = [1, 1]} : vector<4x342xbf16> to vector<4x288xbf16>
    %c32 = arith.constant 32 : index
    %c0_40 = arith.constant 0 : index
    %43 = vector.load %arg9[%c32, %c0_40] : memref<36x288xbf16, #tpu.memory_space<vmem>>, vector<4x288xbf16>
    tpu.vector_store %arg9[%c32, %c0_40], %42 {strides = array<i32>} : memref<36x288xbf16, #tpu.memory_space<vmem>>, vector<4x288xbf16>,
    %44 = vector.extract_strided_slice %9 {offsets = [0, 38], sizes = [4, 288], strides = [1, 1]} : vector<4x342xbf16> to vector<4x288xbf16>
    %c32_41 = arith.constant 32 : index
    %c0_42 = arith.constant 0 : index
    %45 = vector.load %arg10[%c32_41, %c0_42] : memref<36x288xbf16, #tpu.memory_space<vmem>>, vector<4x288xbf16>
    tpu.vector_store %arg10[%c32_41, %c0_42], %44 {strides = array<i32>} : memref<36x288xbf16, #tpu.memory_space<vmem>>, vector<4x288xbf16>,
    %c0_43 = arith.constant 0 : index
    %c0_44 = arith.constant 0 : index
    %46 = vector.load %arg4[%c0_43, %c0_44] : memref<8x36xbf16, #tpu.memory_space<vmem>>, vector<8x36xbf16>
    %c0_45 = arith.constant 0 : index
    %c0_46 = arith.constant 0 : index
    %47 = vector.load %arg9[%c0_45, %c0_46] : memref<36x288xbf16, #tpu.memory_space<vmem>>, vector<36x288xbf16>
    %cst = arith.constant dense<0.000000e+00> : vector<8x288xf32>
    %48 = tpu.matmul %46, %47, %cst {dimension_numbers = #tpu.dot_dimension_numbers<[1], [0], [0], [1], [0, 0, 1, 1], [], []>} : vector<8x36xbf16>, vector<36x288xbf16>, vector<8x288xf32> -> vector<8x288xf32>
    %c0_47 = arith.constant 0 : index
    %c0_48 = arith.constant 0 : index
    %49 = vector.load %arg5[%c0_47, %c0_48] : memref<8x36xbf16, #tpu.memory_space<vmem>>, vector<8x36xbf16>
    %c0_49 = arith.constant 0 : index
    %c0_50 = arith.constant 0 : index
    %50 = vector.load %arg10[%c0_49, %c0_50] : memref<36x288xbf16, #tpu.memory_space<vmem>>, vector<36x288xbf16>
    %cst_51 = arith.constant dense<0.000000e+00> : vector<8x288xf32>
    %51 = tpu.matmul %49, %50, %cst_51 {dimension_numbers = #tpu.dot_dimension_numbers<[1], [0], [0], [1], [0, 0, 1, 1], [], []>} : vector<8x36xbf16>, vector<36x288xbf16>, vector<8x288xf32> -> vector<8x288xf32>
    %c0_52 = arith.constant 0 : index
    %c0_53 = arith.constant 0 : index
    %52 = vector.load %arg6[%c0_52, %c0_53] : memref<8x1xf32, #tpu.memory_space<vmem>>, vector<8x1xf32>
    %c0_54 = arith.constant 0 : index
    %c0_55 = arith.constant 0 : index
    %53 = vector.load %arg7[%c0_54, %c0_55] : memref<8x1xf32, #tpu.memory_space<vmem>>, vector<8x1xf32>
    %54 = arith.addf %48, %51 : vector<8x288xf32>
    %55 = vector.broadcast %52 : vector<8x1xf32> to vector<8x288xf32>
    %56 = arith.mulf %54, %55 : vector<8x288xf32>
    %57 = vector.broadcast %53 : vector<8x1xf32> to vector<8x288xf32>
    %58 = arith.addf %56, %57 : vector<8x288xf32>
    %cst_56 = arith.constant 0.000000e+00 : f32
    %59 = vector.broadcast %cst_56 : f32 to vector<8x288xf32>
    %60 = arith.maximumf %58, %59 : vector<8x288xf32>
    %61 = arith.subf %48, %51 : vector<8x288xf32>
    %62 = vector.broadcast %52 : vector<8x1xf32> to vector<8x288xf32>
    %63 = arith.mulf %61, %62 : vector<8x288xf32>
    %64 = vector.broadcast %53 : vector<8x1xf32> to vector<8x288xf32>
    %65 = arith.addf %63, %64 : vector<8x288xf32>
    %cst_57 = arith.constant 0.000000e+00 : f32
    %66 = vector.broadcast %cst_57 : f32 to vector<8x288xf32>
    %67 = arith.maximumf %65, %66 : vector<8x288xf32>
    %68 = arith.addf %60, %67 : vector<8x288xf32>
    %c0_58 = arith.constant 0 : index
    %c0_59 = arith.constant 0 : index
    %c0_60 = arith.constant 0 : index
    %69 = vector.load %arg8[%c0_58, %c0_59, %c0_60] : memref<1x8x288xf32, #tpu.memory_space<vmem>>, vector<1x8x288xf32>
    %70 = vector.shape_cast %69 : vector<1x8x288xf32> to vector<8x288xf32>
    %71 = vector.shape_cast %68 : vector<8x288xf32> to vector<1x8x288xf32>
    tpu.vector_store %arg8[%c0_58, %c0_59, %c0_60], %71 {strides = array<i32>} : memref<1x8x288xf32, #tpu.memory_space<vmem>>, vector<1x8x288xf32>,
    return
  }
  func.func @transform_0(%arg0: i32, %arg1: i32) -> (i32, i32, i32, i32) {
    %c0_i32 = arith.constant 0 : i32
    %c0_i32_0 = arith.constant 0 : i32
    %c0_i32_1 = arith.constant 0 : i32
    return %arg0, %arg1, %c0_i32, %c0_i32_0 : i32, i32, i32, i32
  }
  func.func @transform_1(%arg0: i32, %arg1: i32) -> (i32, i32, i32, i32) {
    %c0_i32 = arith.constant 0 : i32
    %c0_i32_0 = arith.constant 0 : i32
    %c0_i32_1 = arith.constant 0 : i32
    return %arg0, %arg1, %c0_i32, %c0_i32_0 : i32, i32, i32, i32
  }
  func.func @transform_2(%arg0: i32, %arg1: i32) -> (i32, i32) {
    %c0_i32 = arith.constant 0 : i32
    %c0_i32_0 = arith.constant 0 : i32
    %c0_i32_1 = arith.constant 0 : i32
    return %c0_i32, %c0_i32_0 : i32, i32
  }
  func.func @transform_3(%arg0: i32, %arg1: i32) -> (i32, i32) {
    %c0_i32 = arith.constant 0 : i32
    %c0_i32_0 = arith.constant 0 : i32
    %c0_i32_1 = arith.constant 0 : i32
    return %c0_i32, %c0_i32_0 : i32, i32
  }
  func.func @transform_4(%arg0: i32, %arg1: i32) -> (i32, i32) {
    %c0_i32 = arith.constant 0 : i32
    %c0_i32_0 = arith.constant 0 : i32
    %c0_i32_1 = arith.constant 0 : i32
    return %c0_i32, %c0_i32_0 : i32, i32
  }
  func.func @transform_5(%arg0: i32, %arg1: i32) -> (i32, i32) {
    %c0_i32 = arith.constant 0 : i32
    %c0_i32_0 = arith.constant 0 : i32
    %c0_i32_1 = arith.constant 0 : i32
    return %c0_i32, %c0_i32_0 : i32, i32
  }
  func.func @transform_6(%arg0: i32, %arg1: i32) -> (i32, i32, i32) {
    %c0_i32 = arith.constant 0 : i32
    %c0_i32_0 = arith.constant 0 : i32
    return %arg0, %c0_i32, %arg1 : i32, i32, i32
  }
}

</mosaic_0001>

<llo_original>
// kernel: tpu_custom_call.1
$region0: #{tpu_custom_call.1}
  #allocation0 [shape = 'u32[]', space=smem, size = 0x4, offset = 0x4, fixed_abs, tag = 'smem constant byte address 0x4 - core index']
  #allocation1 [shape = 'u32[144,128]{1,0:T(1,128)}', space=vmem, size = 0x12000, scoped, tag = 'internal scratch']
  #allocation2 [shape = 'bf16[36,288]{1,0:T(8,128)(2,1)}', space=vmem, size = 0x7800, scoped, tag = 'scratch operand']
  #allocation3 [shape = 'bf16[36,288]{1,0:T(8,128)(2,1)}', space=vmem, size = 0x7800, scoped, tag = 'scratch operand']
  %s0 = inlined_call_operand.vmem [shape: bf16[2,1,4,342], index: 0, kind: input, shape index: {}]
  %s1 = inlined_call_operand.hbm [shape: bf16[2,1,4,342], index: 1, kind: input, shape index: {}]
  %s2 = inlined_call_operand.vmem [shape: bf16[8,36], index: 2, kind: input, shape index: {}]
  %s3 = inlined_call_operand.vmem [shape: bf16[8,36], index: 3, kind: input, shape index: {}]
  %s4 = inlined_call_operand.vmem [shape: f32[8,1], index: 4, kind: input, shape index: {}]
  %s5 = inlined_call_operand.vmem [shape: f32[8,1], index: 5, kind: input, shape index: {}]
  %s6 = inlined_call_operand.hbm [shape: f32[2,8,288], index: 6, kind: output, shape index: {}]
  %s7 = sld [smem:[#allocation0]]
  $region61: #{tpu_custom_call.1} parent=0
    _
  %s9 = ssub.s32 1, %s7
  %s10 = scalar_select 0, %s9, %s7
  $region1: #{tpu_custom_call.1} parent=0
    #allocation4 [shape = 'u8[6144]{0}', space=vmem, size = 0x1800, scoped, tag = 'input window, operand 1']
    #allocation5 [shape = 's32[2]{0}', space=sflag, size = 0x8, scoped, tag = 'scoped memory for tpu_custom_call.1']
    #allocation6 [shape = 's32[2]{0}', space=sflag, size = 0x8, scoped, tag = 'scoped memory for tpu_custom_call.1']
    #allocation7 [shape = 'u8[24576]{0}', space=vmem, size = 0x6000, scoped, tag = 'output window, operand 0']
    %11 = vsyncpa [#allocation5], 0
    %s12 = scalar_lea.sflag [#allocation5], 1
    %13 = vsyncpa %s12, 0
    %14 = vsyncpa [#allocation6], 0
    %s15 = scalar_lea.sflag [#allocation6], 1
    %16 = vsyncpa %s15, 0
    loop: start=0, step=1, limit=4
    $region2: #{tpu_custom_call.1} parent=1 // loop_pre_header
      _
    $region3: #{tpu_custom_call.1} parent=1 // loop_header
      %s18 = sphi 0, %s22
      %p19 = scmp.ge.s32.totalorder %s18, 4
      %s25 = sphi 0, %s37
      %s26 = sphi 0, %s33
      %s27 = sphi 0, %s25
      %s28 = sphi 0, %s26
      %s29 = sphi 0, %s27
      %s30 = sphi 0, %s28
      %s42 = sphi 0, %s44
      %s45 = sphi 0, %s42
      %s46 = sphi 0, %s45
      %s62 = sphi 0, %s46
      %s70 = sphi 0, %s72
      %s73 = sphi 0, %s70
      %s74 = sphi 0, %s73
      %s90 = sphi 0, %s74
      %s94 = sphi 0, %s94
      %s96 = sphi 0, %s94
      %s97 = sphi 0, %s96
      %s111 = sphi 0, %s97
      %s115 = sphi 0, %s115
      %s117 = sphi 0, %s115
      %s118 = sphi 0, %s117
      %s132 = sphi 0, %s118
      %s136 = sphi 0, %s136
      %s138 = sphi 0, %s136
      %s139 = sphi 0, %s138
      %s153 = sphi 0, %s139
      %s157 = sphi 0, %s157
      %s159 = sphi 0, %s157
      %s160 = sphi 0, %s159
      %s174 = sphi 0, %s160
      %s182 = sphi 0, %s184
      %s185 = sphi 0, %s182
      %s186 = sphi 0, %s185
      %s202 = sphi 0, %s186
    $region4: #{tpu_custom_call.1} parent=1 // loop_header_branch
      %21 = sbr.rel (%p19) target = $region8
    $region5: #{tpu_custom_call.1} parent=1 // loop_body
      %s23 = ssub.s32 %s18, 1
      %s24 = ssub.s32 %s18, 2
      %s31 = sadd.s32 1, %s26
      %p32 = scmp.ge.s32.totalorder %s31, 1
      %s33 = scalar_select %p32, 0, %s31
      %s34 = sadd.s32 1, %s25
      %s35 = scalar_select %p32, %s34, %s25
      %p36 = scmp.ge.s32.totalorder %s35, 2
      %s37 = scalar_select %p36, 0, %s35
      %s38 = ssub.s32 %s25, %s37
      %s39 = ssub.s32 %s26, %s33
      %s40 = sor.u32 %s38, %s39
      %p41 = scmp.eq.s32.totalorder %s40, 0
      %s43 = sadd.s32 %s42, 1
      %s44 = scalar_select %p41, %s42, %s43
      %p47 = pneg %p41
      %p48 = scmp.eq.s32.totalorder %s18, 1
      %p49 = por %p47, %p48
      %p50 = scmp.ne.s32.totalorder %s42, %s45
      %p51 = scmp.eq.s32.totalorder %s18, 0
      %p52 = por %p50, %p51
      %p53 = scmp.ne.s32.totalorder %s42, %s45
      %p54 = scmp.eq.s32.totalorder %s23, 1
      %p55 = por %p53, %p54
      %p56 = scmp.ne.s32.totalorder %s45, %s46
      %p57 = scmp.eq.s32.totalorder %s23, 0
      %p58 = por %p56, %p57
      %p59 = scmp.ne.s32.totalorder %s45, %s46
      %p60 = scmp.eq.s32.totalorder %s24, 1
      %p61 = por %p59, %p60
      %p63 = scmp.ne.s32.totalorder %s46, %s62
      %p64 = scmp.eq.s32.totalorder %s24, 0
      %p65 = por %p63, %p64
      %s66 = ssub.s32 %s25, %s37
      %s67 = ssub.s32 %s26, %s33
      %s68 = sor.u32 %s66, %s67
      %p69 = scmp.eq.s32.totalorder %s68, 0
      %s71 = sadd.s32 %s70, 1
      %s72 = scalar_select %p69, %s70, %s71
      %p75 = pneg %p69
      %p76 = scmp.eq.s32.totalorder %s18, 1
      %p77 = por %p75, %p76
      %p78 = scmp.ne.s32.totalorder %s70, %s73
      %p79 = scmp.eq.s32.totalorder %s18, 0
      %p80 = por %p78, %p79
      %p81 = scmp.ne.s32.totalorder %s70, %s73
      %p82 = scmp.eq.s32.totalorder %s23, 1
      %p83 = por %p81, %p82
      %p84 = scmp.ne.s32.totalorder %s73, %s74
      %p85 = scmp.eq.s32.totalorder %s23, 0
      %p86 = por %p84, %p85
      %p87 = scmp.ne.s32.totalorder %s73, %s74
      %p88 = scmp.eq.s32.totalorder %s24, 1
      %p89 = por %p87, %p88
      %p91 = scmp.ne.s32.totalorder %s74, %s90
      %p92 = scmp.eq.s32.totalorder %s24, 0
      %p93 = por %p91, %p92
      %s95 = sadd.s32 %s94, 1
      %p98 = scmp.eq.s32.totalorder %s18, 1
      %p99 = scmp.ne.s32.totalorder %s94, %s96
      %p100 = scmp.eq.s32.totalorder %s18, 0
      %p101 = por %p99, %p100
      %p102 = scmp.ne.s32.totalorder %s94, %s96
      %p103 = scmp.eq.s32.totalorder %s23, 1
      %p104 = por %p102, %p103
      %p105 = scmp.ne.s32.totalorder %s96, %s97
      %p106 = scmp.eq.s32.totalorder %s23, 0
      %p107 = por %p105, %p106
      %p108 = scmp.ne.s32.totalorder %s96, %s97
      %p109 = scmp.eq.s32.totalorder %s24, 1
      %p110 = por %p108, %p109
      %p112 = scmp.ne.s32.totalorder %s97, %s111
      %p113 = scmp.eq.s32.totalorder %s24, 0
      %p114 = por %p112, %p113
      %s116 = sadd.s32 %s115, 1
      %p119 = scmp.eq.s32.totalorder %s18, 1
      %p120 = scmp.ne.s32.totalorder %s115, %s117
      %p121 = scmp.eq.s32.totalorder %s18, 0
      %p122 = por %p120, %p121
      %p123 = scmp.ne.s32.totalorder %s115, %s117
      %p124 = scmp.eq.s32.totalorder %s23, 1
      %p125 = por %p123, %p124
      %p126 = scmp.ne.s32.totalorder %s117, %s118
      %p127 = scmp.eq.s32.totalorder %s23, 0
      %p128 = por %p126, %p127
      %p129 = scmp.ne.s32.totalorder %s117, %s118
      %p130 = scmp.eq.s32.totalorder %s24, 1
      %p131 = por %p129, %p130
      %p133 = scmp.ne.s32.totalorder %s118, %s132
      %p134 = scmp.eq.s32.totalorder %s24, 0
      %p135 = por %p133, %p134
      %s137 = sadd.s32 %s136, 1
      %p140 = scmp.eq.s32.totalorder %s18, 1
      %p141 = scmp.ne.s32.totalorder %s136, %s138
      %p142 = scmp.eq.s32.totalorder %s18, 0
      %p143 = por %p141, %p142
      %p144 = scmp.ne.s32.totalorder %s136, %s138
      %p145 = scmp.eq.s32.totalorder %s23, 1
      %p146 = por %p144, %p145
      %p147 = scmp.ne.s32.totalorder %s138, %s139
      %p148 = scmp.eq.s32.totalorder %s23, 0
      %p149 = por %p147, %p148
      %p150 = scmp.ne.s32.totalorder %s138, %s139
      %p151 = scmp.eq.s32.totalorder %s24, 1
      %p152 = por %p150, %p151
      %p154 = scmp.ne.s32.totalorder %s139, %s153
      %p155 = scmp.eq.s32.totalorder %s24, 0
      %p156 = por %p154, %p155
      %s158 = sadd.s32 %s157, 1
      %p161 = scmp.eq.s32.totalorder %s18, 1
      %p162 = scmp.ne.s32.totalorder %s157, %s159
      %p163 = scmp.eq.s32.totalorder %s18, 0
      %p164 = por %p162, %p163
      %p165 = scmp.ne.s32.totalorder %s157, %s159
      %p166 = scmp.eq.s32.totalorder %s23, 1
      %p167 = por %p165, %p166
      %p168 = scmp.ne.s32.totalorder %s159, %s160
      %p169 = scmp.eq.s32.totalorder %s23, 0
      %p170 = por %p168, %p169
      %p171 = scmp.ne.s32.totalorder %s159, %s160
      %p172 = scmp.eq.s32.totalorder %s24, 1
      %p173 = por %p171, %p172
      %p175 = scmp.ne.s32.totalorder %s160, %s174
      %p176 = scmp.eq.s32.totalorder %s24, 0
      %p177 = por %p175, %p176
      %s178 = ssub.s32 %s25, %s37
      %s179 = ssub.s32 %s26, %s33
      %s180 = sor.u32 %s178, %s179
      %p181 = scmp.eq.s32.totalorder %s180, 0
      %s183 = sadd.s32 %s182, 1
      %s184 = scalar_select %p181, %s182, %s183
      %p187 = pneg %p181
      %p188 = scmp.eq.s32.totalorder %s18, 1
      %p189 = por %p187, %p188
      %p190 = scmp.ne.s32.totalorder %s182, %s185
      %p191 = scmp.eq.s32.totalorder %s18, 0
      %p192 = por %p190, %p191
      %p193 = scmp.ne.s32.totalorder %s182, %s185
      %p194 = scmp.eq.s32.totalorder %s23, 1
      %p195 = por %p193, %p194
      %p196 = scmp.ne.s32.totalorder %s185, %s186
      %p197 = scmp.eq.s32.totalorder %s23, 0
      %p198 = por %p196, %p197
      %p199 = scmp.ne.s32.totalorder %s185, %s186
      %p200 = scmp.eq.s32.totalorder %s24, 1
      %p201 = por %p199, %p200
      %p203 = scmp.ne.s32.totalorder %s186, %s202
      %p204 = scmp.eq.s32.totalorder %s24, 0
      %p205 = por %p203, %p204
      %p206 = scmp.le.s32.totalorder 1, %s18
      %p207 = scmp.lt.s32.totalorder %s18, 3
      %p208 = pnand %p206, %p207
      %p209 = pneg %p208
      // Predicated region
      $region9: #{tpu_custom_call.1} parent=5 // pred_check
        _
      $region10: #{tpu_custom_call.1} parent=5 // pred_check_branch
        %211 = sbr.rel (%p208) target = $region12
      $region11: #{tpu_custom_call.1} parent=5 // pred_region
        %s212 = ssub.s32 %s18, 1
        // Predicated region
        $region13: #{tpu_custom_call.1} parent=11 // pred_check
          %p213 = pneg %p107
        $region14: #{tpu_custom_call.1} parent=11 // pred_check_branch
          %215 = sbr.rel (%p213) target = $region16
        $region15: #{tpu_custom_call.1} parent=11 // pred_region
          _
        $region16: #{tpu_custom_call.1} parent=11 // pred_fallthru
          _
        // Predicated region
        $region17: #{tpu_custom_call.1} parent=11 // pred_check
          %p216 = pneg %p128
        $region18: #{tpu_custom_call.1} parent=11 // pred_check_branch
          %218 = sbr.rel (%p216) target = $region20
        $region19: #{tpu_custom_call.1} parent=11 // pred_region
          _
        $region20: #{tpu_custom_call.1} parent=11 // pred_fallthru
          _
        // Predicated region
        $region21: #{tpu_custom_call.1} parent=11 // pred_check
          %p219 = pneg %p149
        $region22: #{tpu_custom_call.1} parent=11 // pred_check_branch
          %221 = sbr.rel (%p219) target = $region24
        $region23: #{tpu_custom_call.1} parent=11 // pred_region
          _
        $region24: #{tpu_custom_call.1} parent=11 // pred_fallthru
          _
        // Predicated region
        $region25: #{tpu_custom_call.1} parent=11 // pred_check
          %p222 = pneg %p170
        $region26: #{tpu_custom_call.1} parent=11 // pred_check_branch
          %224 = sbr.rel (%p222) target = $region28
        $region27: #{tpu_custom_call.1} parent=11 // pred_region
          _
        $region28: #{tpu_custom_call.1} parent=11 // pred_fallthru
          _
      $region12: #{tpu_custom_call.1} parent=5 // pred_fallthru
        _
      %p225 = scmp.lt.s32.totalorder %s18, 2
      // Predicated region
      $region29: #{tpu_custom_call.1} parent=5 // pred_check
        %p226 = pneg %p225
      $region30: #{tpu_custom_call.1} parent=5 // pred_check_branch
        %228 = sbr.rel (%p226) target = $region32
      $region31: #{tpu_custom_call.1} parent=5 // pred_region
        // Predicated region
        $region33: #{tpu_custom_call.1} parent=31 // pred_check
          %p229 = pneg %p52
        $region34: #{tpu_custom_call.1} parent=31 // pred_check_branch
          %231 = sbr.rel (%p229) target = $region36
        $region35: #{tpu_custom_call.1} parent=31 // pred_region
          %p232 = scmp.lt.s32.totalorder %s25, 1
          %s233 = scalar_select %p232, %s25, 1
          %p234 = scmp.lt.s32.totalorder %s26, 0
          %s235 = scalar_select %p234, %s26, 0
          %s236 = smul.addr %s235, 3
          %s237 = smul.addr %s233, 3
          %s238 = sadd.s32 %s236, %s237
          %s239 = smul.addr %s238, 2
          %s240 = scalar_lea.vmem %s0, %s239
        $region36: #{tpu_custom_call.1} parent=31 // pred_fallthru
          _
        // Predicated region
        $region37: #{tpu_custom_call.1} parent=31 // pred_check
          %p241 = pneg %p80
        $region38: #{tpu_custom_call.1} parent=31 // pred_check_branch
          %243 = sbr.rel (%p241) target = $region40
        $region39: #{tpu_custom_call.1} parent=31 // pred_region
          %s244 = sand.u32 %s70, 1
          %s245 = scalar_lea.sflag [#allocation5], %s244
          %s246 = sand.u32 %s70, 1
          %s247 = smul.addr %s246, 6
          %s248 = scalar_lea.vmem [#allocation4], %s247
          %s250 = ssub.s32 96, 96
          %251 = vsyncadd %s245, %s250
          %s252 = smul.addr %s26, 3
          %s253 = smul.addr %s25, 3
          %s254 = sadd.s32 %s252, %s253
          %s255 = smul.addr %s254, 32
          %s256 = scalar_lea.hbm %s1, %s255
          %s258 = sshll.u32 %s248, 4
          %s259 = int_to_ptr.vmem [resolvable:$true] %s258
          %261 = dma.hbm_to_vmem [thread:$0]  %s256, 96, %s259, %s245
        $region40: #{tpu_custom_call.1} parent=31 // pred_fallthru
          _
      $region32: #{tpu_custom_call.1} parent=5 // pred_fallthru
        _
      %p262 = scmp.le.s32.totalorder 1, %s18
      %p263 = scmp.lt.s32.totalorder %s18, 3
      %p264 = pnand %p262, %p263
      %p265 = pneg %p264
      // Predicated region
      $region41: #{tpu_custom_call.1} parent=5 // pred_check
        _
      $region42: #{tpu_custom_call.1} parent=5 // pred_check_branch
        %267 = sbr.rel (%p264) target = $region44
      $region43: #{tpu_custom_call.1} parent=5 // pred_region
        %s268 = ssub.s32 %s18, 1
        %s269 = sand.u32 %s73, 1
        %s270 = scalar_lea.sflag [#allocation5], %s269
        %s271 = sand.u32 %s73, 1
        %s272 = smul.addr %s271, 6
        %s273 = scalar_lea.vmem [#allocation4], %s272
        // Predicated region
        $region45: #{tpu_custom_call.1} parent=43 // pred_check
          %p274 = pneg %p86
        $region46: #{tpu_custom_call.1} parent=43 // pred_check_branch
          %276 = sbr.rel (%p274) target = $region48
        $region47: #{tpu_custom_call.1} parent=43 // pred_region
          %277 = dma.done %s270, 96
        $region48: #{tpu_custom_call.1} parent=43 // pred_fallthru
          _
        %p278 = scmp.lt.s32.totalorder %s27, 1
        %s279 = scalar_select %p278, %s27, 1
        %p280 = scmp.lt.s32.totalorder %s28, 0
        %s281 = scalar_select %p280, %s28, 0
        %s282 = smul.addr %s281, 3
        %s283 = smul.addr %s279, 3
        %s284 = sadd.s32 %s282, %s283
        %s285 = smul.addr %s284, 2
        %s286 = scalar_lea.vmem %s0, %s285
        %p287 = pneg %p58
        %p288 = pneg %p55
        %s289 = sand.u32 %s73, 1
        %s290 = scalar_lea.sflag [#allocation5], %s289
        %s291 = sand.u32 %s73, 1
        %s292 = smul.addr %s291, 6
        %s293 = scalar_lea.vmem [#allocation4], %s292
        %p294 = pneg %p86
        %p295 = pneg %p83
        %p296 = pneg %p107
        %p297 = pneg %p104
        %p298 = pneg %p128
        %p299 = pneg %p125
        %p300 = pneg %p149
        %p301 = pneg %p146
        %p302 = pneg %p170
        %p303 = pneg %p167
        %p304 = pneg %p198
        %p305 = pneg %p195
        %s306 = sand.u32 %s185, 1
        %s307 = scalar_lea.sflag [#allocation6], %s306
        %s308 = sand.u32 %s185, 1
        %s309 = smul.addr %s308, 24
        %s310 = scalar_lea.vmem [#allocation7], %s309
        %p311 = scmp.lt.s32.totalorder %s27, 1
        %s312 = scalar_select %p311, %s27, 1
        %p313 = scmp.lt.s32.totalorder %s28, 0
        %s314 = scalar_select %p313, %s28, 0
        %s315 = smul.addr %s314, 3
        %s316 = smul.addr %s312, 3
        %s317 = sadd.s32 %s315, %s316
        %s318 = smul.addr %s317, 2
        %s319 = scalar_lea.vmem %s0, %s318
        %s320 = smul.u32 3, %s28
        %v322 = vld [vmem:[%s319] sm:$0x3f]
        %v323 = vld [vmem:[%s273] sm:$0x3f]
        %v324 = vadd.bf16 %v322, %v323
        %v325 = vsub.bf16 %v322, %v323
        %v327 = vcombine.high %v324, %v324
        %v329 = vunpack.c.l.s4 1983009808
        %v330 = vunpack.c.0.s8 %v329
        %v331 = vlaneseq
        %v332 = vshrl.u32 %v331, 7
        %v333 = vsub.s32 %v330, %v332
        %v334 = vrot.slane %v324, %v333
        %v336 = vunpack.c.l.s4 1983009808
        %v337 = vunpack.c.0.s8 %v336
        %v338 = vlaneseq
        %v339 = vshrl.u32 %v338, 7
        %v340 = vsub.s32 %v337, %v339
        %v341 = vrot.slane %v327, %v340
        %344 = vst [vmem:[#allocation2] sm:$0x33] %v334
        %vm345 = vcmask 254976
        %346 = vst.msk [vmem:[#allocation2 + $0x8] sm:$0x3] %vm345, %v341
        %v348 = vcombine.high %v325, %v325
        %v350 = vunpack.c.l.s4 1983009808
        %v351 = vunpack.c.0.s8 %v350
        %v352 = vlaneseq
        %v353 = vshrl.u32 %v352, 7
        %v354 = vsub.s32 %v351, %v353
        %v355 = vrot.slane %v325, %v354
        %v357 = vunpack.c.l.s4 1983009808
        %v358 = vunpack.c.0.s8 %v357
        %v359 = vlaneseq
        %v360 = vshrl.u32 %v359, 7
        %v361 = vsub.s32 %v358, %v360
        %v362 = vrot.slane %v348, %v361
        %365 = vst [vmem:[#allocation3] sm:$0x33] %v355
        %366 = vst.msk [vmem:[#allocation3 + $0x8] sm:$0x3] %vm345, %v362
        %v367 = vcombine.low %v324, %v324
        %v369 = vunpack.c.l.s4 1983009808
        %v370 = vunpack.c.0.s8 %v369
        %v371 = vlaneseq
        %v372 = vshrl.u32 %v371, 7
        %v373 = vsub.s32 %v370, %v372
        %v374 = vrot.slane %v367, %v373
        %375 = vrot.lane.b32.xlu0 %v374, 127
        %v376 = vpop.permute.xlu0 %375
        %377 = vrot.lane.b32.xlu0 %v334, 127
        %v378 = vpop.permute.xlu0 %377
        %v379 = vrot.slane %v376, 4
        %v380 = vrot.slane %v378, 4
        %vm381 = vcmask 1043456
        %v382 = vsel %vm381, %v379, %v380
        %vm383 = vcmask 1039360
        %v384 = vsel %vm383, %v376, %v382
        %387 = vst [vmem:[#allocation2] sm:$0xcc] %v384
        %vm388 = vcmask 257026
        %389 = vst.msk [vmem:[#allocation2 + $0x8] sm:$0xc] %vm388, %v378
        %v390 = vcombine.low %v325, %v325
        %v392 = vunpack.c.l.s4 1983009808
        %v393 = vunpack.c.0.s8 %v392
        %v394 = vlaneseq
        %v395 = vshrl.u32 %v394, 7
        %v396 = vsub.s32 %v393, %v395
        %v397 = vrot.slane %v390, %v396
        %398 = vrot.lane.b32.xlu0 %v397, 127
        %v399 = vpop.permute.xlu0 %398
        %400 = vrot.lane.b32.xlu0 %v355, 127
        %v401 = vpop.permute.xlu0 %400
        %v402 = vrot.slane %v399, 4
        %v403 = vrot.slane %v401, 4
        %v404 = vsel %vm381, %v402, %v403
        %v405 = vsel %vm383, %v399, %v404
        %408 = vst [vmem:[#allocation3] sm:$0xcc] %v405
        %409 = vst.msk [vmem:[#allocation3 + $0x8] sm:$0xc] %vm388, %v401
        %410 = vrot.lane.b32.xlu0 %v334, 126
        %v411 = vpop.permute.xlu0 %410
        %412 = vrot.lane.b32.xlu0 %v341, 126
        %v413 = vpop.permute.xlu0 %412
        %v414 = vrot.slane %v411, 4
        %v415 = vrot.slane %v413, 4
        %v416 = vsel %vm381, %v414, %v415
        %vm417 = vcmask 1031168
        %v418 = vsel %vm417, %v411, %v416
        %421 = vst [vmem:[#allocation2 + $0xc] sm:$0x33] %v418
        %422 = vst.msk [vmem:[#allocation2 + $0x14] sm:$0x3] %vm345, %v413
        %423 = vrot.lane.b32.xlu0 %v355, 126
        %v424 = vpop.permute.xlu0 %423
        %425 = vrot.lane.b32.xlu0 %v362, 126
        %v426 = vpop.permute.xlu0 %425
        %v427 = vrot.slane %v424, 4
        %v428 = vrot.slane %v426, 4
        %v429 = vsel %vm381, %v427, %v428
        %v430 = vsel %vm417, %v424, %v429
        %433 = vst [vmem:[#allocation3 + $0xc] sm:$0x33] %v430
        %434 = vst.msk [vmem:[#allocation3 + $0x14] sm:$0x3] %vm345, %v426
        %435 = vrot.lane.b32.xlu0 %v374, 110
        %v436 = vpop.permute.xlu0 %435
        %437 = vrot.lane.b32.xlu0 %v334, 110
        %v438 = vpop.permute.xlu0 %437
        %v439 = vrot.slane %v436, 4
        %v440 = vrot.slane %v438, 4
        %v441 = vsel %vm381, %v439, %v440
        %vm442 = vcmask 900096
        %v443 = vsel %vm442, %v436, %v441
        %446 = vst [vmem:[#allocation2 + $0xc] sm:$0xcc] %v443
        %447 = vst.msk [vmem:[#allocation2 + $0x14] sm:$0xc] %vm388, %v438
        %448 = vrot.lane.b32.xlu0 %v397, 110
        %v449 = vpop.permute.xlu0 %448
        %450 = vrot.lane.b32.xlu0 %v355, 110
        %v451 = vpop.permute.xlu0 %450
        %v452 = vrot.slane %v449, 4
        %v453 = vrot.slane %v451, 4
        %v454 = vsel %vm381, %v452, %v453
        %v455 = vsel %vm442, %v449, %v454
        %458 = vst [vmem:[#allocation3 + $0xc] sm:$0xcc] %v455
        %459 = vst.msk [vmem:[#allocation3 + $0x14] sm:$0xc] %vm388, %v451
        %460 = vrot.lane.b32.xlu0 %v334, 109
        %v461 = vpop.permute.xlu0 %460
        %462 = vrot.lane.b32.xlu0 %v341, 109
        %v463 = vpop.permute.xlu0 %462
        %v464 = vrot.slane %v461, 4
        %v465 = vrot.slane %v463, 4
        %v466 = vsel %vm381, %v464, %v465
        %vm467 = vcmask 891904
        %v468 = vsel %vm467, %v461, %v466
        %471 = vst [vmem:[#allocation2 + $0x18] sm:$0x33] %v468
        %472 = vst.msk [vmem:[#allocation2 + $0x20] sm:$0x3] %vm345, %v463
        %473 = vrot.lane.b32.xlu0 %v355, 109
        %v474 = vpop.permute.xlu0 %473
        %475 = vrot.lane.b32.xlu0 %v362, 109
        %v476 = vpop.permute.xlu0 %475
        %v477 = vrot.slane %v474, 4
        %v478 = vrot.slane %v476, 4
        %v479 = vsel %vm381, %v477, %v478
        %v480 = vsel %vm467, %v474, %v479
        %483 = vst [vmem:[#allocation3 + $0x18] sm:$0x33] %v480
        %484 = vst.msk [vmem:[#allocation3 + $0x20] sm:$0x3] %vm345, %v476
        %485 = vrot.lane.b32.xlu0 %v374, 108
        %v486 = vpop.permute.xlu0 %485
        %487 = vrot.lane.b32.xlu0 %v334, 108
        %v488 = vpop.permute.xlu0 %487
        %v489 = vrot.slane %v486, 4
        %v490 = vrot.slane %v488, 4
        %v491 = vsel %vm381, %v489, %v490
        %vm492 = vcmask 883712
        %v493 = vsel %vm492, %v486, %v491
        %496 = vst [vmem:[#allocation2 + $0x18] sm:$0xcc] %v493
        %497 = vst.msk [vmem:[#allocation2 + $0x20] sm:$0xc] %vm388, %v488
        %498 = vrot.lane.b32.xlu0 %v397, 108
        %v499 = vpop.permute.xlu0 %498
        %500 = vrot.lane.b32.xlu0 %v355, 108
        %v501 = vpop.permute.xlu0 %500
        %v502 = vrot.slane %v499, 4
        %v503 = vrot.slane %v501, 4
        %v504 = vsel %vm381, %v502, %v503
        %v505 = vsel %vm492, %v499, %v504
        %508 = vst [vmem:[#allocation3 + $0x18] sm:$0xcc] %v505
        %509 = vst.msk [vmem:[#allocation3 + $0x20] sm:$0xc] %vm388, %v501
        %510 = vrot.lane.b32.xlu0 %v334, 92
        %v511 = vpop.permute.xlu0 %510
        %512 = vrot.lane.b32.xlu0 %v341, 92
        %v513 = vpop.permute.xlu0 %512
        %v514 = vrot.slane %v511, 4
        %v515 = vrot.slane %v513, 4
        %v516 = vsel %vm381, %v514, %v515
        %vm517 = vcmask 752640
        %v518 = vsel %vm517, %v511, %v516
        %521 = vst [vmem:[#allocation2 + $0x24] sm:$0x33] %v518
        %522 = vst.msk [vmem:[#allocation2 + $0x2c] sm:$0x3] %vm345, %v513
        %523 = vrot.lane.b32.xlu0 %v355, 92
        %v524 = vpop.permute.xlu0 %523
        %525 = vrot.lane.b32.xlu0 %v362, 92
        %v526 = vpop.permute.xlu0 %525
        %v527 = vrot.slane %v524, 4
        %v528 = vrot.slane %v526, 4
        %v529 = vsel %vm381, %v527, %v528
        %v530 = vsel %vm517, %v524, %v529
        %533 = vst [vmem:[#allocation3 + $0x24] sm:$0x33] %v530
        %534 = vst.msk [vmem:[#allocation3 + $0x2c] sm:$0x3] %vm345, %v526
        %535 = vrot.lane.b32.xlu0 %v374, 91
        %v536 = vpop.permute.xlu0 %535
        %537 = vrot.lane.b32.xlu0 %v334, 91
        %v538 = vpop.permute.xlu0 %537
        %v539 = vrot.slane %v536, 4
        %v540 = vrot.slane %v538, 4
        %v541 = vsel %vm381, %v539, %v540
        %vm542 = vcmask 744448
        %v543 = vsel %vm542, %v536, %v541
        %546 = vst [vmem:[#allocation2 + $0x24] sm:$0xcc] %v543
        %547 = vst.msk [vmem:[#allocation2 + $0x2c] sm:$0xc] %vm388, %v538
        %548 = vrot.lane.b32.xlu0 %v397, 91
        %v549 = vpop.permute.xlu0 %548
        %550 = vrot.lane.b32.xlu0 %v355, 91
        %v551 = vpop.permute.xlu0 %550
        %v552 = vrot.slane %v549, 4
        %v553 = vrot.slane %v551, 4
        %v554 = vsel %vm381, %v552, %v553
        %v555 = vsel %vm542, %v549, %v554
        %558 = vst [vmem:[#allocation3 + $0x24] sm:$0xcc] %v555
        %559 = vst.msk [vmem:[#allocation3 + $0x2c] sm:$0xc] %vm388, %v551
        %560 = vrot.lane.b32.xlu0 %v334, 90
        %v561 = vpop.permute.xlu0 %560
        %562 = vrot.lane.b32.xlu0 %v341, 90
        %v563 = vpop.permute.xlu0 %562
        %v564 = vrot.slane %v561, 4
        %v565 = vrot.slane %v563, 4
        %v566 = vsel %vm381, %v564, %v565
        %vm567 = vcmask 736256
        %v568 = vsel %vm567, %v561, %v566
        %571 = vst [vmem:[#allocation2 + $0x30] sm:$0x33] %v568
        %572 = vst.msk [vmem:[#allocation2 + $0x38] sm:$0x3] %vm345, %v563
        %573 = vrot.lane.b32.xlu0 %v355, 90
        %v574 = vpop.permute.xlu0 %573
        %575 = vrot.lane.b32.xlu0 %v362, 90
        %v576 = vpop.permute.xlu0 %575
        %v577 = vrot.slane %v574, 4
        %v578 = vrot.slane %v576, 4
        %v579 = vsel %vm381, %v577, %v578
        %v580 = vsel %vm567, %v574, %v579
        %583 = vst [vmem:[#allocation3 + $0x30] sm:$0x33] %v580
        %584 = vst.msk [vmem:[#allocation3 + $0x38] sm:$0x3] %vm345, %v576
        %v585 = vld [vmem:[%s2] sm:$0xf]
        %v586 = vld [vmem:[#allocation2] sm:$0xff]
        %v587 = vld [vmem:[#allocation2 + $0x8] sm:$0xf]
        %v588 = vld [vmem:[#allocation2 + $0xc] sm:$0xff]
        %v589 = vld [vmem:[#allocation2 + $0x14] sm:$0xf]
        %v590 = vld [vmem:[#allocation2 + $0x18] sm:$0xff]
        %v591 = vld [vmem:[#allocation2 + $0x20] sm:$0xf]
        %v592 = vld [vmem:[#allocation2 + $0x24] sm:$0xff]
        %v593 = vld [vmem:[#allocation2 + $0x2c] sm:$0xf]
        %v594 = vld [vmem:[#allocation2 + $0x30] sm:$0x33]
        %v595 = vld [vmem:[#allocation2 + $0x38] sm:$0x3]
        %v606 = vunpack.c.l.b16 %v586
        %v607 = vunpack.c.h.b16 %v586
        %v608 = vunpack.c.l.b16 %v587
        %v609 = vunpack.c.l.b16 %v588
        %v610 = vunpack.c.h.b16 %v588
        %v611 = vunpack.c.l.b16 %v589
        %v612 = vunpack.c.l.b16 %v590
        %v613 = vunpack.c.h.b16 %v590
        %v614 = vunpack.c.l.b16 %v591
        %v615 = vunpack.c.l.b16 %v592
        %v616 = vunpack.c.h.b16 %v592
        %v617 = vunpack.c.l.b16 %v593
        %v618 = vunpack.c.l.b16 %v594
        %v619 = vunpack.c.h.b16 %v594
        %v620 = vunpack.c.l.b16 %v595
        %v621 = vpack.c.b16 %v609, %v606
        %v622 = vpack.c.b16 %v610, %v607
        %v623 = vpack.c.b16 %v611, %v608
        %v624 = vpack.c.b16 %v615, %v612
        %v625 = vpack.c.b16 %v616, %v613
        %v626 = vpack.c.b16 %v617, %v614
        %v627 = vpack.c.b16 %v618, %v618
        %v628 = vpack.c.b16 %v619, %v619
        %v629 = vpack.c.b16 %v620, %v620
        %vm636 = vcmask 293888
        %v638 = vsel %vm636, %v585, 0
        %vm640 = vcmask 1041408
        %v642 = vsel %vm640, %v627, 0
        %v645 = vsel %vm640, %v628, 0
        %v648 = vsel %vm640, %v629, 0
        %650 = vmatprep.subr.bf16.mxu0 0
        %651 = vmatpush1.bf16.msra.mxu0 0
        %652 = vmatprep.subr.bf16.mxu0 0
        %653 = vmatpush1.bf16.msra.mxu0 0
        %654 = vmatprep.subr.bf16.mxu0 0
        %655 = vmatpush1.bf16.msra.mxu0 0
        %656 = vmatprep.subr.bf16.mxu0 0
        %657 = vmatpush1.bf16.msra.mxu0 0
        %658 = vmatprep.subr.bf16.mxu0 0
        %659 = vmatpush1.bf16.msra.mxu0 0
        %660 = vmatprep.subr.bf16.mxu0 %v645
        %661 = vmatpush1.bf16.msra.mxu0 %v642
        %662 = vmatprep.subr.bf16.mxu0 %v625
        %663 = vmatpush1.bf16.msra.mxu0 %v624
        %664 = vmatprep.subr.bf16.mxu0 %v622
        %665 = vmatpush1.bf16.msra.mxu0 %v621
        %666 = vmatprep.subr.bf16.mxu0 0
        %667 = vmatpush2.bf16.msra.mxu0 0
        %668 = vmatprep.subr.bf16.mxu0 0
        %669 = vmatpush2.bf16.msra.mxu0 0
        %670 = vmatprep.subr.bf16.mxu0 0
        %671 = vmatpush2.bf16.msra.mxu0 0
        %672 = vmatprep.subr.bf16.mxu0 0
        %673 = vmatpush2.bf16.msra.mxu0 0
        %674 = vmatprep.subr.bf16.mxu0 0
        %675 = vmatpush2.bf16.msra.mxu0 0
        %676 = vmatprep.subr.bf16.mxu0 0
        %677 = vmatpush2.bf16.msra.mxu0 0
        %678 = vmatprep.subr.bf16.mxu0 0
        %679 = vmatpush2.bf16.msra.mxu0 0
        %680 = vmatprep.subr.bf16.mxu0 0
        %681 = vmatpush2.bf16.msra.mxu0 0
        %682 = vmatprep.mubr.bf16.mxu0 0
        %683 = vmatmul.mubr.bf16.gmra.mxu0 %v638
        %v684 = vpop.f32.mrf.mxu0
        %v685 = vadd.f32 0.0, %v684
        %v686 = vpop.f32.mrf.mxu0
        %v687 = vadd.f32 0.0, %v686
        %v688 = vpop.f32.mrf.mxu0
        %v689 = vpop.f32.mrf.mxu0
        %690 = vdwg.mxu0
        %691 = vmatprep.subr.bf16.mxu0 0
        %692 = vmatpush1.bf16.msra.mxu0 0
        %693 = vmatprep.subr.bf16.mxu0 0
        %694 = vmatpush1.bf16.msra.mxu0 0
        %695 = vmatprep.subr.bf16.mxu0 0
        %696 = vmatpush1.bf16.msra.mxu0 0
        %697 = vmatprep.subr.bf16.mxu0 0
        %698 = vmatpush1.bf16.msra.mxu0 0
        %699 = vmatprep.subr.bf16.mxu0 0
        %700 = vmatpush1.bf16.msra.mxu0 0
        %701 = vmatprep.subr.bf16.mxu0 0
        %702 = vmatpush1.bf16.msra.mxu0 %v648
        %703 = vmatprep.subr.bf16.mxu0 0
        %704 = vmatpush1.bf16.msra.mxu0 %v626
        %705 = vmatprep.subr.bf16.mxu0 0
        %706 = vmatpush1.bf16.msra.mxu0 %v623
        %707 = vmatprep.subr.bf16.mxu0 0
        %708 = vmatpush2.bf16.msra.mxu0 0
        %709 = vmatprep.subr.bf16.mxu0 0
        %710 = vmatpush2.bf16.msra.mxu0 0
        %711 = vmatprep.subr.bf16.mxu0 0
        %712 = vmatpush2.bf16.msra.mxu0 0
        %713 = vmatprep.subr.bf16.mxu0 0
        %714 = vmatpush2.bf16.msra.mxu0 0
        %715 = vmatprep.subr.bf16.mxu0 0
        %716 = vmatpush2.bf16.msra.mxu0 0
        %717 = vmatprep.subr.bf16.mxu0 0
        %718 = vmatpush2.bf16.msra.mxu0 0
        %719 = vmatprep.subr.bf16.mxu0 0
        %720 = vmatpush2.bf16.msra.mxu0 0
        %721 = vmatprep.subr.bf16.mxu0 0
        %722 = vmatpush2.bf16.msra.mxu0 0
        %723 = vmatprep.mubr.bf16.mxu0 0
        %724 = vmatmul.mubr.bf16.gmra.mxu0 %v638
        %v725 = vpop.f32.mrf.mxu0
        %v726 = vadd.f32 0.0, %v725
        %v727 = vpop.f32.mrf.mxu0
        %v728 = vpop.f32.mrf.mxu0
        %v729 = vpop.f32.mrf.mxu0
        %730 = vdwg.mxu0
        %v731 = vld [vmem:[%s3] sm:$0xf]
        %v732 = vld [vmem:[#allocation3] sm:$0xff]
        %v733 = vld [vmem:[#allocation3 + $0x8] sm:$0xf]
        %v734 = vld [vmem:[#allocation3 + $0xc] sm:$0xff]
        %v735 = vld [vmem:[#allocation3 + $0x14] sm:$0xf]
        %v736 = vld [vmem:[#allocation3 + $0x18] sm:$0xff]
        %v737 = vld [vmem:[#allocation3 + $0x20] sm:$0xf]
        %v738 = vld [vmem:[#allocation3 + $0x24] sm:$0xff]
        %v739 = vld [vmem:[#allocation3 + $0x2c] sm:$0xf]
        %v740 = vld [vmem:[#allocation3 + $0x30] sm:$0x33]
        %v741 = vld [vmem:[#allocation3 + $0x38] sm:$0x3]
        %v752 = vunpack.c.l.b16 %v732
        %v753 = vunpack.c.h.b16 %v732
        %v754 = vunpack.c.l.b16 %v733
        %v755 = vunpack.c.l.b16 %v734
        %v756 = vunpack.c.h.b16 %v734
        %v757 = vunpack.c.l.b16 %v735
        %v758 = vunpack.c.l.b16 %v736
        %v759 = vunpack.c.h.b16 %v736
        %v760 = vunpack.c.l.b16 %v737
        %v761 = vunpack.c.l.b16 %v738
        %v762 = vunpack.c.h.b16 %v738
        %v763 = vunpack.c.l.b16 %v739
        %v764 = vunpack.c.l.b16 %v740
        %v765 = vunpack.c.h.b16 %v740
        %v766 = vunpack.c.l.b16 %v741
        %v767 = vpack.c.b16 %v755, %v752
        %v768 = vpack.c.b16 %v756, %v753
        %v769 = vpack.c.b16 %v757, %v754
        %v770 = vpack.c.b16 %v761, %v758
        %v771 = vpack.c.b16 %v762, %v759
        %v772 = vpack.c.b16 %v763, %v760
        %v773 = vpack.c.b16 %v764, %v764
        %v774 = vpack.c.b16 %v765, %v765
        %v775 = vpack.c.b16 %v766, %v766
        %v783 = vsel %vm636, %v731, 0
        %v786 = vsel %vm640, %v773, 0
        %v789 = vsel %vm640, %v774, 0
        %v792 = vsel %vm640, %v775, 0
        %794 = vmatprep.subr.bf16.mxu0 0
        %795 = vmatpush1.bf16.msra.mxu0 0
        %796 = vmatprep.subr.bf16.mxu0 0
        %797 = vmatpush1.bf16.msra.mxu0 0
        %798 = vmatprep.subr.bf16.mxu0 0
        %799 = vmatpush1.bf16.msra.mxu0 0
        %800 = vmatprep.subr.bf16.mxu0 0
        %801 = vmatpush1.bf16.msra.mxu0 0
        %802 = vmatprep.subr.bf16.mxu0 0
        %803 = vmatpush1.bf16.msra.mxu0 0
        %804 = vmatprep.subr.bf16.mxu0 %v789
        %805 = vmatpush1.bf16.msra.mxu0 %v786
        %806 = vmatprep.subr.bf16.mxu0 %v771
        %807 = vmatpush1.bf16.msra.mxu0 %v770
        %808 = vmatprep.subr.bf16.mxu0 %v768
        %809 = vmatpush1.bf16.msra.mxu0 %v767
        %810 = vmatprep.subr.bf16.mxu0 0
        %811 = vmatpush2.bf16.msra.mxu0 0
        %812 = vmatprep.subr.bf16.mxu0 0
        %813 = vmatpush2.bf16.msra.mxu0 0
        %814 = vmatprep.subr.bf16.mxu0 0
        %815 = vmatpush2.bf16.msra.mxu0 0
        %816 = vmatprep.subr.bf16.mxu0 0
        %817 = vmatpush2.bf16.msra.mxu0 0
        %818 = vmatprep.subr.bf16.mxu0 0
        %819 = vmatpush2.bf16.msra.mxu0 0
        %820 = vmatprep.subr.bf16.mxu0 0
        %821 = vmatpush2.bf16.msra.mxu0 0
        %822 = vmatprep.subr.bf16.mxu0 0
        %823 = vmatpush2.bf16.msra.mxu0 0
        %824 = vmatprep.subr.bf16.mxu0 0
        %825 = vmatpush2.bf16.msra.mxu0 0
        %826 = vmatprep.mubr.bf16.mxu0 0
        %827 = vmatmul.mubr.bf16.gmra.mxu0 %v783
        %v828 = vpop.f32.mrf.mxu0
        %v829 = vadd.f32 0.0, %v828
        %v830 = vpop.f32.mrf.mxu0
        %v831 = vadd.f32 0.0, %v830
        %v832 = vpop.f32.mrf.mxu0
        %v833 = vpop.f32.mrf.mxu0
        %834 = vdwg.mxu0
        %835 = vmatprep.subr.bf16.mxu0 0
        %836 = vmatpush1.bf16.msra.mxu0 0
        %837 = vmatprep.subr.bf16.mxu0 0
        %838 = vmatpush1.bf16.msra.mxu0 0
        %839 = vmatprep.subr.bf16.mxu0 0
        %840 = vmatpush1.bf16.msra.mxu0 0
        %841 = vmatprep.subr.bf16.mxu0 0
        %842 = vmatpush1.bf16.msra.mxu0 0
        %843 = vmatprep.subr.bf16.mxu0 0
        %844 = vmatpush1.bf16.msra.mxu0 0
        %845 = vmatprep.subr.bf16.mxu0 0
        %846 = vmatpush1.bf16.msra.mxu0 %v792
        %847 = vmatprep.subr.bf16.mxu0 0
        %848 = vmatpush1.bf16.msra.mxu0 %v772
        %849 = vmatprep.subr.bf16.mxu0 0
        %850 = vmatpush1.bf16.msra.mxu0 %v769
        %851 = vmatprep.subr.bf16.mxu0 0
        %852 = vmatpush2.bf16.msra.mxu0 0
        %853 = vmatprep.subr.bf16.mxu0 0
        %854 = vmatpush2.bf16.msra.mxu0 0
        %855 = vmatprep.subr.bf16.mxu0 0
        %856 = vmatpush2.bf16.msra.mxu0 0
        %857 = vmatprep.subr.bf16.mxu0 0
        %858 = vmatpush2.bf16.msra.mxu0 0
        %859 = vmatprep.subr.bf16.mxu0 0
        %860 = vmatpush2.bf16.msra.mxu0 0
        %861 = vmatprep.subr.bf16.mxu0 0
        %862 = vmatpush2.bf16.msra.mxu0 0
        %863 = vmatprep.subr.bf16.mxu0 0
        %864 = vmatpush2.bf16.msra.mxu0 0
        %865 = vmatprep.subr.bf16.mxu0 0
        %866 = vmatpush2.bf16.msra.mxu0 0
        %867 = vmatprep.mubr.bf16.mxu0 0
        %868 = vmatmul.mubr.bf16.gmra.mxu0 %v783
        %v869 = vpop.f32.mrf.mxu0
        %v870 = vadd.f32 0.0, %v869
        %v871 = vpop.f32.mrf.mxu0
        %v872 = vpop.f32.mrf.mxu0
        %v873 = vpop.f32.mrf.mxu0
        %874 = vdwg.mxu0
        %v875 = vld [vmem:[%s4] sm:$0xff]
        %v876 = vld [vmem:[%s5] sm:$0xff]
        %v877 = vadd.f32 %v685, %v829
        %v878 = vadd.f32 %v687, %v831
        %v879 = vadd.f32 %v726, %v870
        %881 = vset.pattern.permute.xlu0 0
        %882 = vperm.xlu0 %881, %v875
        %v883 = vpop.permute.xlu0 %882
        %v885 = vmul.f32 %v877, %v883
        %v886 = vmul.f32 %v878, %v883
        %v887 = vmul.f32 %v879, %v883
        %889 = vset.pattern.permute.xlu0 0
        %890 = vperm.xlu0 %889, %v876
        %v891 = vpop.permute.xlu0 %890
        %v893 = vadd.f32 %v885, %v891
        %v894 = vadd.f32 %v886, %v891
        %v895 = vadd.f32 %v887, %v891
        %v896 = vmax.f32 %v893, 0.0
        %v897 = vmax.f32 %v894, 0.0
        %v898 = vmax.f32 %v895, 0.0
        %v899 = vsub.f32 %v685, %v829
        %v900 = vsub.f32 %v687, %v831
        %v901 = vsub.f32 %v726, %v870
        %v902 = vmul.f32 %v899, %v883
        %v903 = vmul.f32 %v900, %v883
        %v904 = vmul.f32 %v901, %v883
        %v905 = vadd.f32 %v902, %v891
        %v906 = vadd.f32 %v903, %v891
        %v907 = vadd.f32 %v904, %v891
        %v908 = vmax.f32 %v905, 0.0
        %v909 = vmax.f32 %v906, 0.0
        %v910 = vmax.f32 %v907, 0.0
        %v911 = vadd.f32 %v896, %v908
        %v912 = vadd.f32 %v897, %v909
        %v913 = vadd.f32 %v898, %v910
        %914 = vst [vmem:[%s310] sm:$0xff] %v911
        %915 = vst [vmem:[%s310 + $0x8] sm:$0xff] %v912
        %vm916 = vcmask 261120
        %917 = vst.msk [vmem:[%s310 + $0x10] sm:$0xff] %vm916, %v913
        %s918 = sand.u32 %s185, 1
        %s919 = scalar_lea.sflag [#allocation6], %s918
        %s920 = sand.u32 %s185, 1
        %s921 = smul.addr %s920, 24
        %s922 = scalar_lea.vmem [#allocation7], %s921
        // Predicated region
        $region49: #{tpu_custom_call.1} parent=43 // pred_check
          %p923 = pneg %p195
        $region50: #{tpu_custom_call.1} parent=43 // pred_check_branch
          %925 = sbr.rel (%p923) target = $region52
        $region51: #{tpu_custom_call.1} parent=43 // pred_region
          %s926 = smul.u32 3, %s28
          %s928 = ssub.s32 384, 384
          %929 = vsyncadd %s919, %s928
          %s930 = smul.addr %s27, 3
          %s931 = sadd.s32 %s926, %s930
          %s932 = smul.addr %s931, 128
          %s933 = scalar_lea.hbm %s6, %s932
          %s935 = sshll.u32 %s922, 4
          %s936 = int_to_ptr.vmem [resolvable:$true] %s935
          %938 = dma.vmem_to_hbm [thread:$0]  %s936, 384, %s933, %s919
        $region52: #{tpu_custom_call.1} parent=43 // pred_fallthru
          _
      $region44: #{tpu_custom_call.1} parent=5 // pred_fallthru
        _
      %p939 = scmp.le.s32.totalorder 2, %s18
      // Predicated region
      $region53: #{tpu_custom_call.1} parent=5 // pred_check
        %p940 = pneg %p939
      $region54: #{tpu_custom_call.1} parent=5 // pred_check_branch
        %942 = sbr.rel (%p940) target = $region56
      $region55: #{tpu_custom_call.1} parent=5 // pred_region
        %s943 = ssub.s32 %s18, 2
        // Predicated region
        $region57: #{tpu_custom_call.1} parent=55 // pred_check
          %p944 = pneg %p201
        $region58: #{tpu_custom_call.1} parent=55 // pred_check_branch
          %946 = sbr.rel (%p944) target = $region60
        $region59: #{tpu_custom_call.1} parent=55 // pred_region
          %s947 = sand.u32 %s186, 1
          %s948 = scalar_lea.sflag [#allocation6], %s947
          %s949 = sand.u32 %s186, 1
          %s950 = smul.addr %s949, 24
          %s951 = scalar_lea.vmem [#allocation7], %s950
          %952 = dma.done %s948, 384
        $region60: #{tpu_custom_call.1} parent=55 // pred_fallthru
          _
      $region56: #{tpu_custom_call.1} parent=5 // pred_fallthru
        _
    $region6: #{tpu_custom_call.1} parent=1 // loop_footer
      %s22 = sadd.s32 1, %s18
    $region7: #{tpu_custom_call.1} parent=1 // loop_footer_branch
      %17 = sbr.rel target = $region3
    $region8: #{tpu_custom_call.1} parent=1 // loop_exit
      _
    %953 = vsyncpa [#allocation5], 1
    %s954 = scalar_lea.sflag [#allocation5], 1
    %955 = vsyncpa %s954, 1
    %956 = vsyncpa [#allocation6], 1
    %s957 = scalar_lea.sflag [#allocation6], 1
    %958 = vsyncpa %s957, 1

</llo_original>
